<compile_context>
chip_gen: v5e
topology: v5e:2x2
jax: 0.10.0
libtpu: 0.0.40
codegen_flags: <defaults>
</compile_context>

<pallas_src>
import functools

import jax
import jax.numpy as jnp
from jax.experimental import pallas as pl
from jax.experimental.pallas import tpu as pltpu


def _sk_kernel(M, C, L, TB,
               x_ref, wf_ref, bnb_ref,
               w1_ref, bn1s_ref, bn1b_ref, w2_ref, out_ref):
    # Parameter tiles -- loaded once per grid step, hoisted out of the per-row loop.
    wf = wf_ref[...]            # [M, C, 3]  depthwise taps with BN scale folded in
    bnb = bnb_ref[...]          # [M, C, 1]  folded BN bias
    w1 = w1_ref[...]            # [C, d]     fc1 weight
    bn1s = bn1s_ref[...]        # [1, d]     folded BN1 scale
    bn1b = bn1b_ref[...]        # [1, d]     folded BN1 bias
    w2 = w2_ref[...]            # [M*C, d]   fc2 weight

    # Edge masks for the roll-based "same" padding, hoisted (valid since dil < L).
    lane = jax.lax.broadcasted_iota(jnp.int32, (C, L), 1)
    mask = {}
    for i in range(M):
        dil = 1 + i
        mask[+dil] = lane < (L - dil)    # valid lanes for tap(+dil)
        mask[-dil] = lane >= dil         # valid lanes for tap(-dil)

    @pl.loop(0, TB)
    def _(r):
        x = x_ref[r].astype(jnp.float32)          # [C, L], f32 compute
        # TODO(synk): on v6e/v7x the conv/blend math could run in bf16 to halve vreg
        # pressure at larger L (v5e has no bf16 VALU); kept f32 here for accuracy.

        def tap(off):
            # tap(off)[:, l] == x[:, l + off], zero outside [0, L): XLU roll + edge mask.
            if off == 0:
                return x
            rr = pltpu.roll(x, (-off) % L, axis=1)
            return jnp.where(mask[off], rr, 0.0)

        # M branches: depthwise dilated conv (k=3, dilation=1+i, "same") + BN bias + ReLU.
        # BN scale is already folded into wf.
        outs = []
        for i in range(M):
            dil = 1 + i
            acc = x * wf[i, :, 1:2]
            acc = acc + tap(-dil) * wf[i, :, 0:1]
            acc = acc + tap(+dil) * wf[i, :, 2:3]
            outs.append(jnp.maximum(acc + bnb[i], 0.0))

        U = outs[0]
        for i in range(1, M):
            U = U + outs[i]

        # Global average pool over L -> s: [C, 1]
        s = jnp.sum(U, axis=1, keepdims=True) * (1.0 / L)

        # fc1 (1x1 conv == dense) + folded BN + ReLU on the VPU (too small for the MXU).
        z = jnp.sum(w1 * s, axis=0, keepdims=True)                # [1, d]
        z = jnp.maximum(z * bn1s + bn1b, 0.0)

        # fc2 -> attention logits, channel index = m*C + c.
        ab = jnp.sum(w2 * z, axis=1, keepdims=True)               # [M*C, 1]

        # Softmax over the M branch axis (per channel); one EUP reciprocal total.
        logits = [ab[i * C:(i + 1) * C, :] for i in range(M)]     # each [C, 1]
        mx = logits[0]
        for i in range(1, M):
            mx = jnp.maximum(mx, logits[i])
        exps = [jnp.exp(l - mx) for l in logits]
        den = exps[0]
        for i in range(1, M):
            den = den + exps[i]
        inv_den = pl.reciprocal(den, approx=True)                 # EUP vrcp (free slot)

        if M == 2:
            # a1 = 1 - a0  =>  V = out1 + a0 * (out0 - out1): one fewer [C, L] FMA and no
            # need to form the second attention map.
            a0 = exps[0] * inv_den                                # [C, 1]
            V = outs[1] + a0 * (outs[0] - outs[1])
        else:
            # TODO(synk): for large M park branch outputs in a VMEM scratch (or recompute
            # the cheap 3-tap branches) instead of keeping them all live in registers.
            V = (exps[0] * inv_den) * outs[0]
            for i in range(1, M):
                V = V + (exps[i] * inv_den) * outs[i]

        out_ref[r] = V.astype(out_ref.dtype)


def _choose_batch_tile(B, C, L, in_bytes, out_bytes, budget_bytes=16 << 20):
    """Largest TB dividing B with double-buffered x+out blocks under budget, and grid >= 2."""
    per_row = 2 * C * L * (in_bytes + out_bytes)      # double-buffered x + out, one row
    cap = max(1, budget_bytes // per_row)
    tb_max = max(1, min(cap, B // 2 if B >= 2 else 1))  # keep >= 2 steps for v7x's 2 TCs
    tb = 1
    for t in range(1, int(tb_max) + 1):
        if B % t == 0:
            tb = t
    return tb


def sk_conv1d_forward(x, params, *, M, out_dtype=jnp.bfloat16):
    B, C, L = x.shape
    assert params["w_folded"].shape[1] == C, \
        "kernel implements the depthwise case (groups == in_channels == out_channels)"
    assert C % 8 == 0
    assert L % 128 == 0, "lane-dense layout requires L % 128 == 0 (pad the sequence outside)"
    assert M < L, "roll-based padding requires max dilation < L"
    d = params["w1"].shape[1]

    in_bytes = jnp.dtype(x.dtype).itemsize
    out_bytes = jnp.dtype(out_dtype).itemsize
    TB = _choose_batch_tile(B, C, L, in_bytes, out_bytes)
    grid = (B // TB,)

    # VMEM budget: double-buffered activation blocks + replicated (f32, double-buffered)
    # params + slack; capped at v7x's 64 MiB physical VMEM, floored at 32 MiB.
    act_bytes = 2 * TB * C * L * (in_bytes + out_bytes)
    param_bytes = 2 * 4 * (M * C * 3 + M * C + C * d + 2 * d + M * C * d)
    vmem_limit = int(min(64 << 20, max(act_bytes + param_bytes + (4 << 20), 32 << 20)))

    kernel = functools.partial(_sk_kernel, M, C, L, TB)

    def rep(shape):  # parameter block replicated across the batch grid
        n = len(shape)
        return pl.BlockSpec(shape, lambda b, n=n: (0,) * n)

    in_specs = [
        pl.BlockSpec((TB, C, L), lambda b: (b, 0, 0)),  # x: TB batch rows per grid step
        rep((M, C, 3)),                                 # BN-scale-folded depthwise taps
        rep((M, C, 1)),                                 # folded BN bias
        rep((C, d)),                                    # fc1 weight (stored as [C, d])
        rep((1, d)),                                    # folded BN1 scale
        rep((1, d)),                                    # folded BN1 bias
        rep((M * C, d)),                                # fc2 weight
    ]
    cost = pl.CostEstimate(
        flops=int(20 * M * B * C * L),
        transcendentals=int(M * B * C),
        bytes_accessed=int(B * C * L * (in_bytes + out_bytes)),
    )
    return pl.pallas_call(
        kernel,
        out_shape=jax.ShapeDtypeStruct((B, C, L), out_dtype),
        grid_spec=pltpu.PrefetchScalarGridSpec(
            num_scalar_prefetch=0,
            grid=grid,
            in_specs=in_specs,
            out_specs=pl.BlockSpec((TB, C, L), lambda b: (b, 0, 0)),
        ),
        compiler_params=pltpu.CompilerParams(
            # TODO(synk): on v7x, pltpu.CORE_PARALLEL on this axis would pin the split
            # across the 2 TensorCores explicitly; "parallel" is kept for portability.
            dimension_semantics=("parallel",),
            vmem_limit_bytes=vmem_limit,
        ),
        cost_estimate=cost,
    )(x, params["w_folded"], params["bn_bias"],
      params["w1"], params["bn1_scale"], params["bn1_bias"], params["w2"])


def init_params(key, in_channels, out_channels, M=2, r=16, Lmin=32):
    """Deterministic synthetic parameters; BN (eval mode) folded to scale/bias, and BN
    scale additionally folded into the depthwise taps (one-time transform)."""
    assert in_channels == out_channels and in_channels % 32 == 0  # groups=32 -> depthwise
    C = out_channels
    d = max(in_channels // r, Lmin)
    eps = 1e-5
    k = jax.random.split(key, 11)
    w = 0.2 * jax.random.normal(k[0], (M, C, 3), jnp.float32)
    gamma = 1.0 + 0.1 * jax.random.normal(k[1], (M, C), jnp.float32)
    beta = 0.1 * jax.random.normal(k[2], (M, C), jnp.float32)
    mean = 0.1 * jax.random.normal(k[3], (M, C), jnp.float32)
    var = jnp.abs(jax.random.normal(k[4], (M, C), jnp.float32)) + 0.5
    scale = gamma / jnp.sqrt(var + eps)
    bn_scale = scale[..., None]                                   # (M, C, 1)
    bn_bias = (beta - mean * scale)[..., None]                    # (M, C, 1)
    w_folded = w * bn_scale                                       # (M, C, 3) kernel-ready taps

    w1 = 0.2 * jax.random.normal(k[5], (C, d), jnp.float32)       # fc1 1x1 conv, as [C, d]
    g1 = 1.0 + 0.1 * jax.random.normal(k[6], (d,), jnp.float32)
    b1 = 0.1 * jax.random.normal(k[7], (d,), jnp.float32)
    m1 = 0.1 * jax.random.normal(k[8], (d,), jnp.float32)
    v1 = jnp.abs(jax.random.normal(k[9], (d,), jnp.float32)) + 0.5
    s1 = g1 / jnp.sqrt(v1 + eps)
    bn1_scale = s1.reshape(1, d)
    bn1_bias = (b1 - m1 * s1).reshape(1, d)

    w2 = 0.2 * jax.random.normal(k[10], (M * C, d), jnp.float32)  # fc2 1x1 conv
    params = dict(w=w, w_folded=w_folded, bn_scale=bn_scale, bn_bias=bn_bias,
                  w1=w1, bn1_scale=bn1_scale, bn1_bias=bn1_bias, w2=w2)
    return params, d


def ref_forward(x, params, *, M):
    """Pure-JAX reference mirroring the PyTorch forward (eval-mode BN, stride=1)."""
    B, C, L = x.shape
    outs = []
    for i in range(M):
        dil = 1 + i
        wi = params["w"][i][:, None, :]                 # (C, 1, 3) OIW
        y = jax.lax.conv_general_dilated(
            x, wi, window_strides=(1,), padding=[(dil, dil)],
            rhs_dilation=(dil,), feature_group_count=C,
            dimension_numbers=("NCH", "OIH", "NCH"))
        y = y * params["bn_scale"][i][None] + params["bn_bias"][i][None]
        outs.append(jnp.maximum(y, 0.0))
    U = outs[0]
    for i in range(1, M):
        U = U + outs[i]
    s = U.mean(axis=2)                                  # global avg pool
    z = jnp.maximum(s @ params["w1"] * params["bn1_scale"] + params["bn1_bias"], 0.0)
    ab = (z @ params["w2"].T).reshape(B, M, C)
    a = jax.nn.softmax(ab, axis=1)
    V = jnp.zeros_like(outs[0])
    for i in range(M):
        V = V + a[:, i, :, None] * outs[i]
    return V


if __name__ == "__main__":
    # groups=32 forces channels % 32 == 0; L chosen lane-dense (multiple of 128).
    B, C, L, M = 4, 32, 128, 2
    key = jax.random.PRNGKey(0)
    kx, kp = jax.random.split(key)
    x = jax.random.normal(kx, (B, C, L), jnp.float32).astype(jnp.bfloat16)  # bf16 input
    params, d = init_params(kp, C, C, M=M)

    out = jax.block_until_ready(sk_conv1d_forward(x, params, M=M))          # bf16 output
    ref = jax.block_until_ready(ref_forward(x.astype(jnp.float32), params, M=M))

    assert out.shape == (B, C, L) and out.dtype == jnp.bfloat16
    out_f32 = out.astype(jnp.float32)
    err = float(jnp.abs(out_f32 - ref).max())
    assert jnp.allclose(out_f32, ref, rtol=2e-2, atol=2e-2), err  # bf16 output tolerance
    print("KERNEL_OK")
</pallas_src>

<mosaic_0001>
module attributes {stable_mosaic.version = 11 : i64} {
  func.func @_sk_kernel(%arg0: i32, %arg1: memref<2x32x128xbf16, #tpu.memory_space<vmem>>, %arg2: memref<2x32x3xf32, #tpu.memory_space<vmem>>, %arg3: memref<2x32x1xf32, #tpu.memory_space<vmem>>, %arg4: memref<32x32xf32, #tpu.memory_space<vmem>>, %arg5: memref<1x32xf32, #tpu.memory_space<vmem>>, %arg6: memref<1x32xf32, #tpu.memory_space<vmem>>, %arg7: memref<64x32xf32, #tpu.memory_space<vmem>>, %arg8: memref<2x32x128xbf16, #tpu.memory_space<vmem>>) attributes {dimension_semantics = [#tpu.dimension_semantics<parallel>], iteration_bounds = array<i64: 2>, scalar_prefetch = 0 : i64, scratch_operands = 0 : i64, tpu.core_type = #tpu.core_type<tc>, window_params = [{transform_indices = @transform_0, window_bounds = array<i64: 2, 32, 128>}, {pipeline_mode = #tpu.pipeline_mode<synchronous>, transform_indices = @transform_1, window_bounds = array<i64: 2, 32, 3>}, {pipeline_mode = #tpu.pipeline_mode<synchronous>, transform_indices = @transform_2, window_bounds = array<i64: 2, 32, 1>}, {pipeline_mode = #tpu.pipeline_mode<synchronous>, transform_indices = @transform_3, window_bounds = array<i64: 32, 32>}, {pipeline_mode = #tpu.pipeline_mode<synchronous>, transform_indices = @transform_4, window_bounds = array<i64: 1, 32>}, {pipeline_mode = #tpu.pipeline_mode<synchronous>, transform_indices = @transform_5, window_bounds = array<i64: 1, 32>}, {pipeline_mode = #tpu.pipeline_mode<synchronous>, transform_indices = @transform_6, window_bounds = array<i64: 64, 32>}, {transform_indices = @transform_7, window_bounds = array<i64: 2, 32, 128>}]} {
    %c0 = arith.constant 0 : index
    %c0_0 = arith.constant 0 : index
    %c0_1 = arith.constant 0 : index
    %0 = vector.load %arg2[%c0, %c0_0, %c0_1] : memref<2x32x3xf32, #tpu.memory_space<vmem>>, vector<2x32x3xf32>
    %c0_2 = arith.constant 0 : index
    %c0_3 = arith.constant 0 : index
    %c0_4 = arith.constant 0 : index
    %1 = vector.load %arg3[%c0_2, %c0_3, %c0_4] : memref<2x32x1xf32, #tpu.memory_space<vmem>>, vector<2x32x1xf32>
    %c0_5 = arith.constant 0 : index
    %c0_6 = arith.constant 0 : index
    %2 = vector.load %arg4[%c0_5, %c0_6] : memref<32x32xf32, #tpu.memory_space<vmem>>, vector<32x32xf32>
    %c0_7 = arith.constant 0 : index
    %c0_8 = arith.constant 0 : index
    %3 = vector.load %arg5[%c0_7, %c0_8] : memref<1x32xf32, #tpu.memory_space<vmem>>, vector<1x32xf32>
    %c0_9 = arith.constant 0 : index
    %c0_10 = arith.constant 0 : index
    %4 = vector.load %arg6[%c0_9, %c0_10] : memref<1x32xf32, #tpu.memory_space<vmem>>, vector<1x32xf32>
    %c0_11 = arith.constant 0 : index
    %c0_12 = arith.constant 0 : index
    %5 = vector.load %arg7[%c0_11, %c0_12] : memref<64x32xf32, #tpu.memory_space<vmem>>, vector<64x32xf32>
    %6 = tpu.iota {dimensions = array<i32: 1>} : vector<32x128xi32>
    %c127_i32 = arith.constant 127 : i32
    %7 = vector.broadcast %c127_i32 : i32 to vector<32x128xi32>
    %8 = arith.cmpi slt, %6, %7 : vector<32x128xi32>
    %c1_i32 = arith.constant 1 : i32
    %9 = vector.broadcast %c1_i32 : i32 to vector<32x128xi32>
    %10 = arith.cmpi sge, %6, %9 : vector<32x128xi32>
    %c126_i32 = arith.constant 126 : i32
    %11 = vector.broadcast %c126_i32 : i32 to vector<32x128xi32>
    %12 = arith.cmpi slt, %6, %11 : vector<32x128xi32>
    %c2_i32 = arith.constant 2 : i32
    %13 = vector.broadcast %c2_i32 : i32 to vector<32x128xi32>
    %14 = arith.cmpi sge, %6, %13 : vector<32x128xi32>
    %c0_i32 = arith.constant 0 : i32
    %c2_i32_13 = arith.constant 2 : i32
    %15 = arith.addi %c0_i32, %c2_i32_13 : i32
    %c1_i32_14 = arith.constant 1 : i32
    scf.for %arg9 = %c0_i32 to %15 step %c1_i32_14  : i32 {
      %c1_i32_16 = arith.constant 1 : i32
      %16 = arith.muli %arg9, %c1_i32_16 : i32
      %c0_i32_17 = arith.constant 0 : i32
      %17 = arith.addi %c0_i32_17, %16 : i32
      %18 = arith.index_cast %17 : i32 to index
      %c0_18 = arith.constant 0 : index
      %c0_19 = arith.constant 0 : index
      %19 = vector.load %arg1[%18, %c0_18, %c0_19] : memref<2x32x128xbf16, #tpu.memory_space<vmem>>, vector<1x32x128xbf16>
      %20 = vector.shape_cast %19 : vector<1x32x128xbf16> to vector<32x128xbf16>
      %21 = arith.extf %20 : vector<32x128xbf16> to vector<32x128xf32>
      %22 = vector.extract_strided_slice %0 {offsets = [0, 0, 1], sizes = [1, 32, 1], strides = [1, 1, 1]} : vector<2x32x3xf32> to vector<1x32x1xf32>
      %23 = vector.shape_cast %22 : vector<1x32x1xf32> to vector<32x1xf32>
      %24 = vector.broadcast %23 : vector<32x1xf32> to vector<32x128xf32>
      %25 = arith.mulf %21, %24 : vector<32x128xf32>
      %c1_i32_20 = arith.constant 1 : i32
      %26 = tpu.dynamic_rotate %21 by %c1_i32_20 dim 1 : vector<32x128xf32>, i32 -> vector<32x128xf32>
      %cst = arith.constant 0.000000e+00 : f32
      %27 = vector.broadcast %cst : f32 to vector<32x128xf32>
      %28 = arith.select %10, %26, %27 : vector<32x128xi1>, vector<32x128xf32>
      %29 = vector.extract_strided_slice %0 {offsets = [0, 0, 0], sizes = [1, 32, 1], strides = [1, 1, 1]} : vector<2x32x3xf32> to vector<1x32x1xf32>
      %30 = vector.shape_cast %29 : vector<1x32x1xf32> to vector<32x1xf32>
      %31 = vector.broadcast %30 : vector<32x1xf32> to vector<32x128xf32>
      %32 = arith.mulf %28, %31 : vector<32x128xf32>
      %33 = arith.addf %25, %32 : vector<32x128xf32>
      %c127_i32_21 = arith.constant 127 : i32
      %34 = tpu.dynamic_rotate %21 by %c127_i32_21 dim 1 : vector<32x128xf32>, i32 -> vector<32x128xf32>
      %cst_22 = arith.constant 0.000000e+00 : f32
      %35 = vector.broadcast %cst_22 : f32 to vector<32x128xf32>
      %36 = arith.select %8, %34, %35 : vector<32x128xi1>, vector<32x128xf32>
      %37 = vector.extract_strided_slice %0 {offsets = [0, 0, 2], sizes = [1, 32, 1], strides = [1, 1, 1]} : vector<2x32x3xf32> to vector<1x32x1xf32>
      %38 = vector.shape_cast %37 : vector<1x32x1xf32> to vector<32x1xf32>
      %39 = vector.broadcast %38 : vector<32x1xf32> to vector<32x128xf32>
      %40 = arith.mulf %36, %39 : vector<32x128xf32>
      %41 = arith.addf %33, %40 : vector<32x128xf32>
      %42 = vector.extract_strided_slice %1 {offsets = [0, 0, 0], sizes = [1, 32, 1], strides = [1, 1, 1]} : vector<2x32x1xf32> to vector<1x32x1xf32>
      %43 = vector.shape_cast %42 : vector<1x32x1xf32> to vector<32x1xf32>
      %44 = vector.broadcast %43 : vector<32x1xf32> to vector<32x128xf32>
      %45 = arith.addf %41, %44 : vector<32x128xf32>
      %cst_23 = arith.constant 0.000000e+00 : f32
      %46 = vector.broadcast %cst_23 : f32 to vector<32x128xf32>
      %47 = arith.maximumf %45, %46 : vector<32x128xf32>
      %48 = vector.extract_strided_slice %0 {offsets = [1, 0, 1], sizes = [1, 32, 1], strides = [1, 1, 1]} : vector<2x32x3xf32> to vector<1x32x1xf32>
      %49 = vector.shape_cast %48 : vector<1x32x1xf32> to vector<32x1xf32>
      %50 = vector.broadcast %49 : vector<32x1xf32> to vector<32x128xf32>
      %51 = arith.mulf %21, %50 : vector<32x128xf32>
      %c2_i32_24 = arith.constant 2 : i32
      %52 = tpu.dynamic_rotate %21 by %c2_i32_24 dim 1 : vector<32x128xf32>, i32 -> vector<32x128xf32>
      %cst_25 = arith.constant 0.000000e+00 : f32
      %53 = vector.broadcast %cst_25 : f32 to vector<32x128xf32>
      %54 = arith.select %14, %52, %53 : vector<32x128xi1>, vector<32x128xf32>
      %55 = vector.extract_strided_slice %0 {offsets = [1, 0, 0], sizes = [1, 32, 1], strides = [1, 1, 1]} : vector<2x32x3xf32> to vector<1x32x1xf32>
      %56 = vector.shape_cast %55 : vector<1x32x1xf32> to vector<32x1xf32>
      %57 = vector.broadcast %56 : vector<32x1xf32> to vector<32x128xf32>
      %58 = arith.mulf %54, %57 : vector<32x128xf32>
      %59 = arith.addf %51, %58 : vector<32x128xf32>
      %c126_i32_26 = arith.constant 126 : i32
      %60 = tpu.dynamic_rotate %21 by %c126_i32_26 dim 1 : vector<32x128xf32>, i32 -> vector<32x128xf32>
      %cst_27 = arith.constant 0.000000e+00 : f32
      %61 = vector.broadcast %cst_27 : f32 to vector<32x128xf32>
      %62 = arith.select %12, %60, %61 : vector<32x128xi1>, vector<32x128xf32>
      %63 = vector.extract_strided_slice %0 {offsets = [1, 0, 2], sizes = [1, 32, 1], strides = [1, 1, 1]} : vector<2x32x3xf32> to vector<1x32x1xf32>
      %64 = vector.shape_cast %63 : vector<1x32x1xf32> to vector<32x1xf32>
      %65 = vector.broadcast %64 : vector<32x1xf32> to vector<32x128xf32>
      %66 = arith.mulf %62, %65 : vector<32x128xf32>
      %67 = arith.addf %59, %66 : vector<32x128xf32>
      %68 = vector.extract_strided_slice %1 {offsets = [1, 0, 0], sizes = [1, 32, 1], strides = [1, 1, 1]} : vector<2x32x1xf32> to vector<1x32x1xf32>
      %69 = vector.shape_cast %68 : vector<1x32x1xf32> to vector<32x1xf32>
      %70 = vector.broadcast %69 : vector<32x1xf32> to vector<32x128xf32>
      %71 = arith.addf %67, %70 : vector<32x128xf32>
      %cst_28 = arith.constant 0.000000e+00 : f32
      %72 = vector.broadcast %cst_28 : f32 to vector<32x128xf32>
      %73 = arith.maximumf %71, %72 : vector<32x128xf32>
      %74 = arith.addf %47, %73 : vector<32x128xf32>
      %cst_29 = arith.constant dense<0.000000e+00> : vector<32xf32>
      %75 = vector.multi_reduction <add>, %74, %cst_29 [1] : vector<32x128xf32> to vector<32xf32>
      %76 = vector.shape_cast %75 : vector<32xf32> to vector<32x1xf32>
      %cst_30 = arith.constant 7.812500e-03 : f32
      %77 = vector.broadcast %cst_30 : f32 to vector<32x1xf32>
      %78 = arith.mulf %76, %77 : vector<32x1xf32>
      %79 = vector.broadcast %78 : vector<32x1xf32> to vector<32x32xf32>
      %80 = arith.mulf %2, %79 : vector<32x32xf32>
      %cst_31 = arith.constant dense<0.000000e+00> : vector<32xf32>
      %81 = vector.multi_reduction <add>, %80, %cst_31 [0] : vector<32x32xf32> to vector<32xf32>
      %82 = vector.shape_cast %81 : vector<32xf32> to vector<1x32xf32>
      %83 = arith.mulf %82, %3 : vector<1x32xf32>
      %84 = arith.addf %83, %4 : vector<1x32xf32>
      %cst_32 = arith.constant 0.000000e+00 : f32
      %85 = vector.broadcast %cst_32 : f32 to vector<1x32xf32>
      %86 = arith.maximumf %84, %85 : vector<1x32xf32>
      %87 = vector.broadcast %86 : vector<1x32xf32> to vector<64x32xf32>
      %88 = arith.mulf %5, %87 : vector<64x32xf32>
      %cst_33 = arith.constant dense<0.000000e+00> : vector<64xf32>
      %89 = vector.multi_reduction <add>, %88, %cst_33 [1] : vector<64x32xf32> to vector<64xf32>
      %90 = vector.shape_cast %89 : vector<64xf32> to vector<64x1xf32>
      %91 = vector.extract_strided_slice %90 {offsets = [0, 0], sizes = [32, 1], strides = [1, 1]} : vector<64x1xf32> to vector<32x1xf32>
      %92 = vector.extract_strided_slice %90 {offsets = [32, 0], sizes = [32, 1], strides = [1, 1]} : vector<64x1xf32> to vector<32x1xf32>
      %93 = arith.maximumf %91, %92 : vector<32x1xf32>
      %94 = arith.subf %91, %93 : vector<32x1xf32>
      %95 = math.exp %94 : vector<32x1xf32>
      %96 = arith.subf %92, %93 : vector<32x1xf32>
      %97 = math.exp %96 : vector<32x1xf32>
      %98 = arith.addf %95, %97 : vector<32x1xf32>
      %99 = tpu.reciprocal %98 {approx = true} : vector<32x1xf32> -> vector<32x1xf32>
      %100 = arith.mulf %95, %99 : vector<32x1xf32>
      %101 = arith.subf %47, %73 : vector<32x128xf32>
      %102 = vector.broadcast %100 : vector<32x1xf32> to vector<32x128xf32>
      %103 = arith.mulf %102, %101 : vector<32x128xf32>
      %104 = arith.addf %73, %103 : vector<32x128xf32>
      %105 = arith.truncf %104 : vector<32x128xf32> to vector<32x128xbf16>
      %106 = arith.index_cast %17 : i32 to index
      %c0_34 = arith.constant 0 : index
      %c0_35 = arith.constant 0 : index
      %107 = vector.load %arg8[%106, %c0_34, %c0_35] : memref<2x32x128xbf16, #tpu.memory_space<vmem>>, vector<1x32x128xbf16>
      %108 = vector.shape_cast %107 : vector<1x32x128xbf16> to vector<32x128xbf16>
      %109 = vector.shape_cast %105 : vector<32x128xbf16> to vector<1x32x128xbf16>
      tpu.vector_store %arg8[%106, %c0_34, %c0_35], %109 {strides = array<i32>} : memref<2x32x128xbf16, #tpu.memory_space<vmem>>, vector<1x32x128xbf16>,
    }
    %c2_i32_15 = arith.constant 2 : i32
    return
  }
  func.func @transform_0(%arg0: i32) -> (i32, i32, i32) {
    %c0_i32 = arith.constant 0 : i32
    %c0_i32_0 = arith.constant 0 : i32
    %c0_i32_1 = arith.constant 0 : i32
    return %arg0, %c0_i32, %c0_i32_0 : i32, i32, i32
  }
  func.func @transform_1(%arg0: i32) -> (i32, i32, i32) {
    %c0_i32 = arith.constant 0 : i32
    %c0_i32_0 = arith.constant 0 : i32
    %c0_i32_1 = arith.constant 0 : i32
    %c0_i32_2 = arith.constant 0 : i32
    return %c0_i32, %c0_i32_0, %c0_i32_1 : i32, i32, i32
  }
  func.func @transform_2(%arg0: i32) -> (i32, i32, i32) {
    %c0_i32 = arith.constant 0 : i32
    %c0_i32_0 = arith.constant 0 : i32
    %c0_i32_1 = arith.constant 0 : i32
    %c0_i32_2 = arith.constant 0 : i32
    return %c0_i32, %c0_i32_0, %c0_i32_1 : i32, i32, i32
  }
  func.func @transform_3(%arg0: i32) -> (i32, i32) {
    %c0_i32 = arith.constant 0 : i32
    %c0_i32_0 = arith.constant 0 : i32
    %c0_i32_1 = arith.constant 0 : i32
    return %c0_i32, %c0_i32_0 : i32, i32
  }
  func.func @transform_4(%arg0: i32) -> (i32, i32) {
    %c0_i32 = arith.constant 0 : i32
    %c0_i32_0 = arith.constant 0 : i32
    %c0_i32_1 = arith.constant 0 : i32
    return %c0_i32, %c0_i32_0 : i32, i32
  }
  func.func @transform_5(%arg0: i32) -> (i32, i32) {
    %c0_i32 = arith.constant 0 : i32
    %c0_i32_0 = arith.constant 0 : i32
    %c0_i32_1 = arith.constant 0 : i32
    return %c0_i32, %c0_i32_0 : i32, i32
  }
  func.func @transform_6(%arg0: i32) -> (i32, i32) {
    %c0_i32 = arith.constant 0 : i32
    %c0_i32_0 = arith.constant 0 : i32
    %c0_i32_1 = arith.constant 0 : i32
    return %c0_i32, %c0_i32_0 : i32, i32
  }
  func.func @transform_7(%arg0: i32) -> (i32, i32, i32) {
    %c0_i32 = arith.constant 0 : i32
    %c0_i32_0 = arith.constant 0 : i32
    %c0_i32_1 = arith.constant 0 : i32
    return %arg0, %c0_i32, %c0_i32_0 : i32, i32, i32
  }
}

</mosaic_0001>

<llo_original>
// kernel: tpu_custom_call.1
$region0: #{tpu_custom_call.1}
  #allocation0 [shape = 'u32[]', space=smem, size = 0x4, offset = 0x4, fixed_abs, tag = 'smem constant byte address 0x4 - core index']
  #allocation1 [shape = 'u32[72,128]{1,0:T(1,128)}', space=vmem, size = 0x9000, scoped, tag = 'internal scratch']
  %s0 = inlined_call_operand.vmem [shape: bf16[4,32,128], index: 0, kind: input, shape index: {}]
  %s1 = inlined_call_operand.vmem [shape: f32[2,32,3], index: 1, kind: input, shape index: {}]
  %s2 = inlined_call_operand.vmem [shape: f32[2,32,1], index: 2, kind: input, shape index: {}]
  %s3 = inlined_call_operand.vmem [shape: f32[32,32], index: 3, kind: input, shape index: {}]
  %s4 = inlined_call_operand.vmem [shape: f32[1,32], index: 4, kind: input, shape index: {}]
  %s5 = inlined_call_operand.vmem [shape: f32[1,32], index: 5, kind: input, shape index: {}]
  %s6 = inlined_call_operand.vmem [shape: f32[64,32], index: 6, kind: input, shape index: {}]
  %s7 = inlined_call_operand.hbm [shape: bf16[4,32,128], index: 7, kind: output, shape index: {}]
  %s8 = sld [smem:[#allocation0]]
  $region68: #{tpu_custom_call.1} parent=0
    _
  %s10 = ssub.s32 1, %s8
  %s11 = scalar_select 0, %s10, %s8
  $region1: #{tpu_custom_call.1} parent=0
    #allocation2 [shape = 'u8[32768]{0}', space=vmem, size = 0x8000, scoped, tag = 'output window, operand 0']
    #allocation3 [shape = 's32[2]{0}', space=sflag, size = 0x8, scoped, tag = 'scoped memory for tpu_custom_call.1']
    %12 = vsyncpa [#allocation3], 0
    %s13 = scalar_lea.sflag [#allocation3], 1
    %14 = vsyncpa %s13, 0
    loop: start=0, step=1, limit=4
    $region2: #{tpu_custom_call.1} parent=1 // loop_pre_header
      _
    $region3: #{tpu_custom_call.1} parent=1 // loop_header
      %s16 = sphi 0, %s20
      %p17 = scmp.ge.s32.totalorder %s16, 4
      %s26 = sphi 0, %s28
      %s29 = sphi 0, %s26
      %s30 = sphi 0, %s29
      %s46 = sphi 0, %s30
      %s50 = sphi 0, %s50
      %s52 = sphi 0, %s50
      %s53 = sphi 0, %s52
      %s67 = sphi 0, %s53
      %s71 = sphi 0, %s71
      %s73 = sphi 0, %s71
      %s74 = sphi 0, %s73
      %s88 = sphi 0, %s74
      %s92 = sphi 0, %s92
      %s94 = sphi 0, %s92
      %s95 = sphi 0, %s94
      %s109 = sphi 0, %s95
      %s113 = sphi 0, %s113
      %s115 = sphi 0, %s113
      %s116 = sphi 0, %s115
      %s130 = sphi 0, %s116
      %s134 = sphi 0, %s134
      %s136 = sphi 0, %s134
      %s137 = sphi 0, %s136
      %s151 = sphi 0, %s137
      %s155 = sphi 0, %s155
      %s157 = sphi 0, %s155
      %s158 = sphi 0, %s157
      %s172 = sphi 0, %s158
      %s178 = sphi 0, %s180
      %s181 = sphi 0, %s178
      %s182 = sphi 0, %s181
      %s198 = sphi 0, %s182
    $region4: #{tpu_custom_call.1} parent=1 // loop_header_branch
      %19 = sbr.rel (%p17) target = $region8
    $region5: #{tpu_custom_call.1} parent=1 // loop_body
      %s21 = ssub.s32 %s16, 1
      %s22 = ssub.s32 %s16, 2
      %s23 = sadd.s32 %s16, 1
      %s24 = ssub.s32 %s16, %s23
      %p25 = scmp.eq.s32.totalorder %s24, 0
      %s27 = sadd.s32 %s26, 1
      %s28 = scalar_select %p25, %s26, %s27
      %p31 = pneg %p25
      %p32 = scmp.eq.s32.totalorder %s16, 1
      %p33 = por %p31, %p32
      %p34 = scmp.ne.s32.totalorder %s26, %s29
      %p35 = scmp.eq.s32.totalorder %s16, 0
      %p36 = por %p34, %p35
      %p37 = scmp.ne.s32.totalorder %s26, %s29
      %p38 = scmp.eq.s32.totalorder %s21, 1
      %p39 = por %p37, %p38
      %p40 = scmp.ne.s32.totalorder %s29, %s30
      %p41 = scmp.eq.s32.totalorder %s21, 0
      %p42 = por %p40, %p41
      %p43 = scmp.ne.s32.totalorder %s29, %s30
      %p44 = scmp.eq.s32.totalorder %s22, 1
      %p45 = por %p43, %p44
      %p47 = scmp.ne.s32.totalorder %s30, %s46
      %p48 = scmp.eq.s32.totalorder %s22, 0
      %p49 = por %p47, %p48
      %s51 = sadd.s32 %s50, 1
      %p54 = scmp.eq.s32.totalorder %s16, 1
      %p55 = scmp.ne.s32.totalorder %s50, %s52
      %p56 = scmp.eq.s32.totalorder %s16, 0
      %p57 = por %p55, %p56
      %p58 = scmp.ne.s32.totalorder %s50, %s52
      %p59 = scmp.eq.s32.totalorder %s21, 1
      %p60 = por %p58, %p59
      %p61 = scmp.ne.s32.totalorder %s52, %s53
      %p62 = scmp.eq.s32.totalorder %s21, 0
      %p63 = por %p61, %p62
      %p64 = scmp.ne.s32.totalorder %s52, %s53
      %p65 = scmp.eq.s32.totalorder %s22, 1
      %p66 = por %p64, %p65
      %p68 = scmp.ne.s32.totalorder %s53, %s67
      %p69 = scmp.eq.s32.totalorder %s22, 0
      %p70 = por %p68, %p69
      %s72 = sadd.s32 %s71, 1
      %p75 = scmp.eq.s32.totalorder %s16, 1
      %p76 = scmp.ne.s32.totalorder %s71, %s73
      %p77 = scmp.eq.s32.totalorder %s16, 0
      %p78 = por %p76, %p77
      %p79 = scmp.ne.s32.totalorder %s71, %s73
      %p80 = scmp.eq.s32.totalorder %s21, 1
      %p81 = por %p79, %p80
      %p82 = scmp.ne.s32.totalorder %s73, %s74
      %p83 = scmp.eq.s32.totalorder %s21, 0
      %p84 = por %p82, %p83
      %p85 = scmp.ne.s32.totalorder %s73, %s74
      %p86 = scmp.eq.s32.totalorder %s22, 1
      %p87 = por %p85, %p86
      %p89 = scmp.ne.s32.totalorder %s74, %s88
      %p90 = scmp.eq.s32.totalorder %s22, 0
      %p91 = por %p89, %p90
      %s93 = sadd.s32 %s92, 1
      %p96 = scmp.eq.s32.totalorder %s16, 1
      %p97 = scmp.ne.s32.totalorder %s92, %s94
      %p98 = scmp.eq.s32.totalorder %s16, 0
      %p99 = por %p97, %p98
      %p100 = scmp.ne.s32.totalorder %s92, %s94
      %p101 = scmp.eq.s32.totalorder %s21, 1
      %p102 = por %p100, %p101
      %p103 = scmp.ne.s32.totalorder %s94, %s95
      %p104 = scmp.eq.s32.totalorder %s21, 0
      %p105 = por %p103, %p104
      %p106 = scmp.ne.s32.totalorder %s94, %s95
      %p107 = scmp.eq.s32.totalorder %s22, 1
      %p108 = por %p106, %p107
      %p110 = scmp.ne.s32.totalorder %s95, %s109
      %p111 = scmp.eq.s32.totalorder %s22, 0
      %p112 = por %p110, %p111
      %s114 = sadd.s32 %s113, 1
      %p117 = scmp.eq.s32.totalorder %s16, 1
      %p118 = scmp.ne.s32.totalorder %s113, %s115
      %p119 = scmp.eq.s32.totalorder %s16, 0
      %p120 = por %p118, %p119
      %p121 = scmp.ne.s32.totalorder %s113, %s115
      %p122 = scmp.eq.s32.totalorder %s21, 1
      %p123 = por %p121, %p122
      %p124 = scmp.ne.s32.totalorder %s115, %s116
      %p125 = scmp.eq.s32.totalorder %s21, 0
      %p126 = por %p124, %p125
      %p127 = scmp.ne.s32.totalorder %s115, %s116
      %p128 = scmp.eq.s32.totalorder %s22, 1
      %p129 = por %p127, %p128
      %p131 = scmp.ne.s32.totalorder %s116, %s130
      %p132 = scmp.eq.s32.totalorder %s22, 0
      %p133 = por %p131, %p132
      %s135 = sadd.s32 %s134, 1
      %p138 = scmp.eq.s32.totalorder %s16, 1
      %p139 = scmp.ne.s32.totalorder %s134, %s136
      %p140 = scmp.eq.s32.totalorder %s16, 0
      %p141 = por %p139, %p140
      %p142 = scmp.ne.s32.totalorder %s134, %s136
      %p143 = scmp.eq.s32.totalorder %s21, 1
      %p144 = por %p142, %p143
      %p145 = scmp.ne.s32.totalorder %s136, %s137
      %p146 = scmp.eq.s32.totalorder %s21, 0
      %p147 = por %p145, %p146
      %p148 = scmp.ne.s32.totalorder %s136, %s137
      %p149 = scmp.eq.s32.totalorder %s22, 1
      %p150 = por %p148, %p149
      %p152 = scmp.ne.s32.totalorder %s137, %s151
      %p153 = scmp.eq.s32.totalorder %s22, 0
      %p154 = por %p152, %p153
      %s156 = sadd.s32 %s155, 1
      %p159 = scmp.eq.s32.totalorder %s16, 1
      %p160 = scmp.ne.s32.totalorder %s155, %s157
      %p161 = scmp.eq.s32.totalorder %s16, 0
      %p162 = por %p160, %p161
      %p163 = scmp.ne.s32.totalorder %s155, %s157
      %p164 = scmp.eq.s32.totalorder %s21, 1
      %p165 = por %p163, %p164
      %p166 = scmp.ne.s32.totalorder %s157, %s158
      %p167 = scmp.eq.s32.totalorder %s21, 0
      %p168 = por %p166, %p167
      %p169 = scmp.ne.s32.totalorder %s157, %s158
      %p170 = scmp.eq.s32.totalorder %s22, 1
      %p171 = por %p169, %p170
      %p173 = scmp.ne.s32.totalorder %s158, %s172
      %p174 = scmp.eq.s32.totalorder %s22, 0
      %p175 = por %p173, %p174
      %s176 = ssub.s32 %s16, %s23
      %p177 = scmp.eq.s32.totalorder %s176, 0
      %s179 = sadd.s32 %s178, 1
      %s180 = scalar_select %p177, %s178, %s179
      %p183 = pneg %p177
      %p184 = scmp.eq.s32.totalorder %s16, 1
      %p185 = por %p183, %p184
      %p186 = scmp.ne.s32.totalorder %s178, %s181
      %p187 = scmp.eq.s32.totalorder %s16, 0
      %p188 = por %p186, %p187
      %p189 = scmp.ne.s32.totalorder %s178, %s181
      %p190 = scmp.eq.s32.totalorder %s21, 1
      %p191 = por %p189, %p190
      %p192 = scmp.ne.s32.totalorder %s181, %s182
      %p193 = scmp.eq.s32.totalorder %s21, 0
      %p194 = por %p192, %p193
      %p195 = scmp.ne.s32.totalorder %s181, %s182
      %p196 = scmp.eq.s32.totalorder %s22, 1
      %p197 = por %p195, %p196
      %p199 = scmp.ne.s32.totalorder %s182, %s198
      %p200 = scmp.eq.s32.totalorder %s22, 0
      %p201 = por %p199, %p200
      %p202 = scmp.le.s32.totalorder 1, %s16
      %p203 = scmp.lt.s32.totalorder %s16, 3
      %p204 = pnand %p202, %p203
      %p205 = pneg %p204
      // Predicated region
      $region9: #{tpu_custom_call.1} parent=5 // pred_check
        _
      $region10: #{tpu_custom_call.1} parent=5 // pred_check_branch
        %207 = sbr.rel (%p204) target = $region12
      $region11: #{tpu_custom_call.1} parent=5 // pred_region
        %s208 = ssub.s32 %s16, 1
        // Predicated region
        $region13: #{tpu_custom_call.1} parent=11 // pred_check
          %p209 = pneg %p63
        $region14: #{tpu_custom_call.1} parent=11 // pred_check_branch
          %211 = sbr.rel (%p209) target = $region16
        $region15: #{tpu_custom_call.1} parent=11 // pred_region
          _
        $region16: #{tpu_custom_call.1} parent=11 // pred_fallthru
          _
        // Predicated region
        $region17: #{tpu_custom_call.1} parent=11 // pred_check
          %p212 = pneg %p84
        $region18: #{tpu_custom_call.1} parent=11 // pred_check_branch
          %214 = sbr.rel (%p212) target = $region20
        $region19: #{tpu_custom_call.1} parent=11 // pred_region
          _
        $region20: #{tpu_custom_call.1} parent=11 // pred_fallthru
          _
        // Predicated region
        $region21: #{tpu_custom_call.1} parent=11 // pred_check
          %p215 = pneg %p105
        $region22: #{tpu_custom_call.1} parent=11 // pred_check_branch
          %217 = sbr.rel (%p215) target = $region24
        $region23: #{tpu_custom_call.1} parent=11 // pred_region
          _
        $region24: #{tpu_custom_call.1} parent=11 // pred_fallthru
          _
        // Predicated region
        $region25: #{tpu_custom_call.1} parent=11 // pred_check
          %p218 = pneg %p126
        $region26: #{tpu_custom_call.1} parent=11 // pred_check_branch
          %220 = sbr.rel (%p218) target = $region28
        $region27: #{tpu_custom_call.1} parent=11 // pred_region
          _
        $region28: #{tpu_custom_call.1} parent=11 // pred_fallthru
          _
        // Predicated region
        $region29: #{tpu_custom_call.1} parent=11 // pred_check
          %p221 = pneg %p147
        $region30: #{tpu_custom_call.1} parent=11 // pred_check_branch
          %223 = sbr.rel (%p221) target = $region32
        $region31: #{tpu_custom_call.1} parent=11 // pred_region
          _
        $region32: #{tpu_custom_call.1} parent=11 // pred_fallthru
          _
        // Predicated region
        $region33: #{tpu_custom_call.1} parent=11 // pred_check
          %p224 = pneg %p168
        $region34: #{tpu_custom_call.1} parent=11 // pred_check_branch
          %226 = sbr.rel (%p224) target = $region36
        $region35: #{tpu_custom_call.1} parent=11 // pred_region
          _
        $region36: #{tpu_custom_call.1} parent=11 // pred_fallthru
          _
      $region12: #{tpu_custom_call.1} parent=5 // pred_fallthru
        _
      %p227 = scmp.lt.s32.totalorder %s16, 2
      // Predicated region
      $region37: #{tpu_custom_call.1} parent=5 // pred_check
        %p228 = pneg %p227
      $region38: #{tpu_custom_call.1} parent=5 // pred_check_branch
        %230 = sbr.rel (%p228) target = $region40
      $region39: #{tpu_custom_call.1} parent=5 // pred_region
        // Predicated region
        $region41: #{tpu_custom_call.1} parent=39 // pred_check
          %p231 = pneg %p36
        $region42: #{tpu_custom_call.1} parent=39 // pred_check_branch
          %233 = sbr.rel (%p231) target = $region44
        $region43: #{tpu_custom_call.1} parent=39 // pred_region
          %s234 = smul.u32 2, %s16
          %p235 = scmp.lt.s32.totalorder %s234, 3
          %s236 = scalar_select %p235, %s234, 3
          %s237 = smul.addr %s236, 4
          %s238 = smul.addr %s237, 4
          %s239 = scalar_lea.vmem %s0, %s238
          %s240 = smul.u32 2, %s16
        $region44: #{tpu_custom_call.1} parent=39 // pred_fallthru
          _
      $region40: #{tpu_custom_call.1} parent=5 // pred_fallthru
        _
      %p241 = scmp.le.s32.totalorder 1, %s16
      %p242 = scmp.lt.s32.totalorder %s16, 3
      %p243 = pnand %p241, %p242
      %p244 = pneg %p243
      // Predicated region
      $region45: #{tpu_custom_call.1} parent=5 // pred_check
        _
      $region46: #{tpu_custom_call.1} parent=5 // pred_check_branch
        %246 = sbr.rel (%p243) target = $region48
      $region47: #{tpu_custom_call.1} parent=5 // pred_region
        %s247 = ssub.s32 %s16, 1
        %s248 = smul.u32 2, %s21
        %p249 = scmp.lt.s32.totalorder %s248, 3
        %s250 = scalar_select %p249, %s248, 3
        %s251 = smul.addr %s250, 4
        %s252 = smul.addr %s251, 4
        %s253 = scalar_lea.vmem %s0, %s252
        %p254 = pneg %p42
        %p255 = pneg %p39
        %p256 = pneg %p63
        %p257 = pneg %p60
        %p258 = pneg %p84
        %p259 = pneg %p81
        %p260 = pneg %p105
        %p261 = pneg %p102
        %p262 = pneg %p126
        %p263 = pneg %p123
        %p264 = pneg %p147
        %p265 = pneg %p144
        %p266 = pneg %p168
        %p267 = pneg %p165
        %p268 = pneg %p194
        %p269 = pneg %p191
        %s270 = sand.u32 %s181, 1
        %s271 = scalar_lea.sflag [#allocation3], %s270
        %s272 = sand.u32 %s181, 1
        %s273 = smul.addr %s272, 32
        %s274 = scalar_lea.vmem [#allocation2], %s273
        %s275 = smul.u32 2, %s21
        %p276 = scmp.lt.s32.totalorder %s275, 3
        %s277 = scalar_select %p276, %s275, 3
        %s278 = smul.addr %s277, 4
        %s279 = smul.addr %s278, 4
        %s280 = scalar_lea.vmem %s0, %s279
        %s281 = smul.u32 2, %s21
        %s282 = smul.u32 2, %s21
        %v283 = vld [vmem:[%s1] sm:$0xff]
        %v284 = vld [vmem:[%s1 + $0x8] sm:$0xff]
        %v285 = vld [vmem:[%s1 + $0x10] sm:$0xff]
        %v286 = vld [vmem:[%s1 + $0x18] sm:$0xff]
        %v287 = vld [vmem:[%s1 + $0x20] sm:$0xff]
        %v288 = vld [vmem:[%s1 + $0x28] sm:$0xff]
        %v289 = vld [vmem:[%s1 + $0x30] sm:$0xff]
        %v290 = vld [vmem:[%s1 + $0x38] sm:$0xff]
        %v291 = vld [vmem:[%s2] sm:$0xff]
        %v292 = vld [vmem:[%s2 + $0x8] sm:$0xff]
        %v293 = vld [vmem:[%s2 + $0x10] sm:$0xff]
        %v294 = vld [vmem:[%s2 + $0x18] sm:$0xff]
        %v295 = vld [vmem:[%s2 + $0x20] sm:$0xff]
        %v296 = vld [vmem:[%s2 + $0x28] sm:$0xff]
        %v297 = vld [vmem:[%s2 + $0x30] sm:$0xff]
        %v298 = vld [vmem:[%s2 + $0x38] sm:$0xff]
        %v299 = vld [vmem:[%s3] sm:$0xff]
        %v300 = vld [vmem:[%s3 + $0x8] sm:$0xff]
        %v301 = vld [vmem:[%s3 + $0x10] sm:$0xff]
        %v302 = vld [vmem:[%s3 + $0x18] sm:$0xff]
        %v303 = vld [vmem:[%s4] sm:$0x1]
        %v304 = vld [vmem:[%s5] sm:$0x1]
        %v305 = vld [vmem:[%s6] sm:$0xff]
        %v306 = vld [vmem:[%s6 + $0x8] sm:$0xff]
        %v307 = vld [vmem:[%s6 + $0x10] sm:$0xff]
        %v308 = vld [vmem:[%s6 + $0x18] sm:$0xff]
        %v309 = vld [vmem:[%s6 + $0x20] sm:$0xff]
        %v310 = vld [vmem:[%s6 + $0x28] sm:$0xff]
        %v311 = vld [vmem:[%s6 + $0x30] sm:$0xff]
        %v312 = vld [vmem:[%s6 + $0x38] sm:$0xff]
        %v313 = vlaneseq
        %v314 = vand.u32 %v313, 127
        %vm315 = vcmp.lt.s32.totalorder %v314, 127
        %vm316 = vcmp.ge.s32.totalorder %v314, 1
        %vm317 = vcmp.lt.s32.totalorder %v314, 126
        %vm318 = vcmp.ge.s32.totalorder %v314, 2
        loop: start=0, step=1, limit=2
        $region49: #{tpu_custom_call.1} parent=47 // loop_pre_header
          _
        $region50: #{tpu_custom_call.1} parent=47 // loop_header
          %s320 = sphi 0, %s324
          %p321 = scmp.ge.s32.totalorder %s320, 2
        $region51: #{tpu_custom_call.1} parent=47 // loop_header_branch
          %323 = sbr.rel (%p321) target = $region55
        $region52: #{tpu_custom_call.1} parent=47 // loop_body
          %s325 = smul.u32 %s320, 4
          %s326 = smul.addr %s325, 4
          %s327 = scalar_lea.vmem %s280, %s326
          %v328 = vld [vmem:[%s327] sm:$0xf]
          %v329 = vld [vmem:[%s327 + $0x4] sm:$0xf]
          %v330 = vld [vmem:[%s327 + $0x8] sm:$0xf]
          %v331 = vld [vmem:[%s327 + $0xc] sm:$0xf]
          %v332 = vunpack.c.l.bf16 %v328
          %v333 = vunpack.c.l.bf16 %v329
          %v334 = vunpack.c.l.bf16 %v330
          %v335 = vunpack.c.l.bf16 %v331
          %337 = vset.pattern.permute.xlu0 1
          %338 = vperm.xlu0 %337, %v283
          %v339 = vpop.permute.xlu0 %338
          %342 = vset.pattern.permute.xlu0 1
          %343 = vperm.xlu0 %342, %v284
          %v344 = vpop.permute.xlu0 %343
          %347 = vset.pattern.permute.xlu0 1
          %348 = vperm.xlu0 %347, %v285
          %v349 = vpop.permute.xlu0 %348
          %352 = vset.pattern.permute.xlu0 1
          %353 = vperm.xlu0 %352, %v286
          %v354 = vpop.permute.xlu0 %353
          %v356 = vmul.f32 %v332, %v339
          %v357 = vmul.f32 %v333, %v344
          %v358 = vmul.f32 %v334, %v349
          %v359 = vmul.f32 %v335, %v354
          %360 = vrot.lane.b32.xlu0 %v332, 1
          %v361 = vpop.permute.xlu0 %360
          %362 = vrot.lane.b32.xlu0 %v333, 1
          %v363 = vpop.permute.xlu0 %362
          %364 = vrot.lane.b32.xlu0 %v334, 1
          %v365 = vpop.permute.xlu0 %364
          %366 = vrot.lane.b32.xlu0 %v335, 1
          %v367 = vpop.permute.xlu0 %366
          %v368 = vsel %vm316, %v361, 0.0
          %v369 = vsel %vm316, %v363, 0.0
          %v370 = vsel %vm316, %v365, 0.0
          %v371 = vsel %vm316, %v367, 0.0
          %372 = vset.pattern.permute.xlu0 0
          %373 = vperm.xlu0 %372, %v283
          %v374 = vpop.permute.xlu0 %373
          %376 = vset.pattern.permute.xlu0 0
          %377 = vperm.xlu0 %376, %v284
          %v378 = vpop.permute.xlu0 %377
          %380 = vset.pattern.permute.xlu0 0
          %381 = vperm.xlu0 %380, %v285
          %v382 = vpop.permute.xlu0 %381
          %384 = vset.pattern.permute.xlu0 0
          %385 = vperm.xlu0 %384, %v286
          %v386 = vpop.permute.xlu0 %385
          %v388 = vmul.f32 %v368, %v374
          %v389 = vmul.f32 %v369, %v378
          %v390 = vmul.f32 %v370, %v382
          %v391 = vmul.f32 %v371, %v386
          %v392 = vadd.f32 %v356, %v388
          %v393 = vadd.f32 %v357, %v389
          %v394 = vadd.f32 %v358, %v390
          %v395 = vadd.f32 %v359, %v391
          %396 = vrot.lane.b32.xlu0 %v332, 127
          %v397 = vpop.permute.xlu0 %396
          %398 = vrot.lane.b32.xlu0 %v333, 127
          %v399 = vpop.permute.xlu0 %398
          %400 = vrot.lane.b32.xlu0 %v334, 127
          %v401 = vpop.permute.xlu0 %400
          %402 = vrot.lane.b32.xlu0 %v335, 127
          %v403 = vpop.permute.xlu0 %402
          %v404 = vsel %vm315, %v397, 0.0
          %v405 = vsel %vm315, %v399, 0.0
          %v406 = vsel %vm315, %v401, 0.0
          %v407 = vsel %vm315, %v403, 0.0
          %408 = vset.pattern.permute.xlu0 2
          %409 = vperm.xlu0 %408, %v283
          %v410 = vpop.permute.xlu0 %409
          %412 = vset.pattern.permute.xlu0 2
          %413 = vperm.xlu0 %412, %v284
          %v414 = vpop.permute.xlu0 %413
          %416 = vset.pattern.permute.xlu0 2
          %417 = vperm.xlu0 %416, %v285
          %v418 = vpop.permute.xlu0 %417
          %420 = vset.pattern.permute.xlu0 2
          %421 = vperm.xlu0 %420, %v286
          %v422 = vpop.permute.xlu0 %421
          %v424 = vmul.f32 %v404, %v410
          %v425 = vmul.f32 %v405, %v414
          %v426 = vmul.f32 %v406, %v418
          %v427 = vmul.f32 %v407, %v422
          %v428 = vadd.f32 %v392, %v424
          %v429 = vadd.f32 %v393, %v425
          %v430 = vadd.f32 %v394, %v426
          %v431 = vadd.f32 %v395, %v427
          %433 = vset.pattern.permute.xlu0 0
          %434 = vperm.xlu0 %433, %v291
          %v435 = vpop.permute.xlu0 %434
          %438 = vset.pattern.permute.xlu0 0
          %439 = vperm.xlu0 %438, %v292
          %v440 = vpop.permute.xlu0 %439
          %443 = vset.pattern.permute.xlu0 0
          %444 = vperm.xlu0 %443, %v293
          %v445 = vpop.permute.xlu0 %444
          %448 = vset.pattern.permute.xlu0 0
          %449 = vperm.xlu0 %448, %v294
          %v450 = vpop.permute.xlu0 %449
          %v452 = vadd.f32 %v428, %v435
          %v453 = vadd.f32 %v429, %v440
          %v454 = vadd.f32 %v430, %v445
          %v455 = vadd.f32 %v431, %v450
          %v456 = vmax.f32 %v452, 0.0
          %v457 = vmax.f32 %v453, 0.0
          %v458 = vmax.f32 %v454, 0.0
          %v459 = vmax.f32 %v455, 0.0
          %461 = vset.pattern.permute.xlu0 1
          %462 = vperm.xlu0 %461, %v287
          %v463 = vpop.permute.xlu0 %462
          %466 = vset.pattern.permute.xlu0 1
          %467 = vperm.xlu0 %466, %v288
          %v468 = vpop.permute.xlu0 %467
          %471 = vset.pattern.permute.xlu0 1
          %472 = vperm.xlu0 %471, %v289
          %v473 = vpop.permute.xlu0 %472
          %476 = vset.pattern.permute.xlu0 1
          %477 = vperm.xlu0 %476, %v290
          %v478 = vpop.permute.xlu0 %477
          %v480 = vmul.f32 %v332, %v463
          %v481 = vmul.f32 %v333, %v468
          %v482 = vmul.f32 %v334, %v473
          %v483 = vmul.f32 %v335, %v478
          %484 = vrot.lane.b32.xlu0 %v332, 2
          %v485 = vpop.permute.xlu0 %484
          %486 = vrot.lane.b32.xlu0 %v333, 2
          %v487 = vpop.permute.xlu0 %486
          %488 = vrot.lane.b32.xlu0 %v334, 2
          %v489 = vpop.permute.xlu0 %488
          %490 = vrot.lane.b32.xlu0 %v335, 2
          %v491 = vpop.permute.xlu0 %490
          %v492 = vsel %vm318, %v485, 0.0
          %v493 = vsel %vm318, %v487, 0.0
          %v494 = vsel %vm318, %v489, 0.0
          %v495 = vsel %vm318, %v491, 0.0
          %496 = vset.pattern.permute.xlu0 0
          %497 = vperm.xlu0 %496, %v287
          %v498 = vpop.permute.xlu0 %497
          %500 = vset.pattern.permute.xlu0 0
          %501 = vperm.xlu0 %500, %v288
          %v502 = vpop.permute.xlu0 %501
          %504 = vset.pattern.permute.xlu0 0
          %505 = vperm.xlu0 %504, %v289
          %v506 = vpop.permute.xlu0 %505
          %508 = vset.pattern.permute.xlu0 0
          %509 = vperm.xlu0 %508, %v290
          %v510 = vpop.permute.xlu0 %509
          %v512 = vmul.f32 %v492, %v498
          %v513 = vmul.f32 %v493, %v502
          %v514 = vmul.f32 %v494, %v506
          %v515 = vmul.f32 %v495, %v510
          %v516 = vadd.f32 %v480, %v512
          %v517 = vadd.f32 %v481, %v513
          %v518 = vadd.f32 %v482, %v514
          %v519 = vadd.f32 %v483, %v515
          %520 = vrot.lane.b32.xlu0 %v332, 126
          %v521 = vpop.permute.xlu0 %520
          %522 = vrot.lane.b32.xlu0 %v333, 126
          %v523 = vpop.permute.xlu0 %522
          %524 = vrot.lane.b32.xlu0 %v334, 126
          %v525 = vpop.permute.xlu0 %524
          %526 = vrot.lane.b32.xlu0 %v335, 126
          %v527 = vpop.permute.xlu0 %526
          %v528 = vsel %vm317, %v521, 0.0
          %v529 = vsel %vm317, %v523, 0.0
          %v530 = vsel %vm317, %v525, 0.0
          %v531 = vsel %vm317, %v527, 0.0
          %532 = vset.pattern.permute.xlu0 2
          %533 = vperm.xlu0 %532, %v287
          %v534 = vpop.permute.xlu0 %533
          %536 = vset.pattern.permute.xlu0 2
          %537 = vperm.xlu0 %536, %v288
          %v538 = vpop.permute.xlu0 %537
          %540 = vset.pattern.permute.xlu0 2
          %541 = vperm.xlu0 %540, %v289
          %v542 = vpop.permute.xlu0 %541
          %544 = vset.pattern.permute.xlu0 2
          %545 = vperm.xlu0 %544, %v290
          %v546 = vpop.permute.xlu0 %545
          %v548 = vmul.f32 %v528, %v534
          %v549 = vmul.f32 %v529, %v538
          %v550 = vmul.f32 %v530, %v542
          %v551 = vmul.f32 %v531, %v546
          %v552 = vadd.f32 %v516, %v548
          %v553 = vadd.f32 %v517, %v549
          %v554 = vadd.f32 %v518, %v550
          %v555 = vadd.f32 %v519, %v551
          %557 = vset.pattern.permute.xlu0 0
          %558 = vperm.xlu0 %557, %v295
          %v559 = vpop.permute.xlu0 %558
          %562 = vset.pattern.permute.xlu0 0
          %563 = vperm.xlu0 %562, %v296
          %v564 = vpop.permute.xlu0 %563
          %567 = vset.pattern.permute.xlu0 0
          %568 = vperm.xlu0 %567, %v297
          %v569 = vpop.permute.xlu0 %568
          %572 = vset.pattern.permute.xlu0 0
          %573 = vperm.xlu0 %572, %v298
          %v574 = vpop.permute.xlu0 %573
          %v576 = vadd.f32 %v552, %v559
          %v577 = vadd.f32 %v553, %v564
          %v578 = vadd.f32 %v554, %v569
          %v579 = vadd.f32 %v555, %v574
          %v580 = vmax.f32 %v576, 0.0
          %v581 = vmax.f32 %v577, 0.0
          %v582 = vmax.f32 %v578, 0.0
          %v583 = vmax.f32 %v579, 0.0
          %v584 = vadd.f32 %v456, %v580
          %v585 = vadd.f32 %v457, %v581
          %v586 = vadd.f32 %v458, %v582
          %v587 = vadd.f32 %v459, %v583
          %588 = vadd.xlane.f32.xlu0 %v584
          %v589 = vpop.xlane.xlu0 %588
          %590 = vadd.xlane.f32.xlu0 %v585
          %v591 = vpop.xlane.xlu0 %590
          %592 = vadd.xlane.f32.xlu0 %v586
          %v593 = vpop.xlane.xlu0 %592
          %594 = vadd.xlane.f32.xlu0 %v587
          %v595 = vpop.xlane.xlu0 %594
          %v596 = vmul.f32 %v589, 0.0078125
          %v597 = vmul.f32 %v591, 0.0078125
          %v598 = vmul.f32 %v593, 0.0078125
          %v599 = vmul.f32 %v595, 0.0078125
          %v600 = vmul.f32 %v299, %v596
          %v601 = vmul.f32 %v300, %v597
          %v602 = vmul.f32 %v301, %v598
          %v603 = vmul.f32 %v302, %v599
          %vm604 = vcmask 261120
          %v605 = vsel %vm604, %v600, 0.0
          %v606 = vsel %vm604, %v601, 0.0
          %v607 = vadd.f32 %v605, %v606
          %v608 = vsel %vm604, %v602, 0.0
          %v609 = vadd.f32 %v607, %v608
          %v610 = vsel %vm604, %v603, 0.0
          %v611 = vadd.f32 %v609, %v610
          %v612 = vrot.slane %v611, 4
          %v613 = vadd.f32 %v611, %v612
          %v614 = vrot.slane %v613, 2
          %v615 = vadd.f32 %v613, %v614
          %v616 = vrot.slane %v615, 1
          %v617 = vadd.f32 %v615, %v616
          %v618 = vmul.f32 %v617, %v303
          %v619 = vadd.f32 %v618, %v304
          %v620 = vmax.f32 %v619, 0.0
          %v621 = vperm.slane %v620, 0
          %v622 = vmul.f32 %v305, %v621
          %v623 = vmul.f32 %v306, %v621
          %v624 = vmul.f32 %v307, %v621
          %v625 = vmul.f32 %v308, %v621
          %v626 = vmul.f32 %v309, %v621
          %v627 = vmul.f32 %v310, %v621
          %v628 = vmul.f32 %v311, %v621
          %v629 = vmul.f32 %v312, %v621
          %v630 = vsel %vm604, %v622, 0.0
          %631 = vadd.xlane.f32.xlu0 %v630
          %v632 = vpop.xlane.xlu0 %631
          %v633 = vsel %vm604, %v623, 0.0
          %634 = vadd.xlane.f32.xlu0 %v633
          %v635 = vpop.xlane.xlu0 %634
          %v636 = vsel %vm604, %v624, 0.0
          %637 = vadd.xlane.f32.xlu0 %v636
          %v638 = vpop.xlane.xlu0 %637
          %v639 = vsel %vm604, %v625, 0.0
          %640 = vadd.xlane.f32.xlu0 %v639
          %v641 = vpop.xlane.xlu0 %640
          %v642 = vsel %vm604, %v626, 0.0
          %643 = vadd.xlane.f32.xlu0 %v642
          %v644 = vpop.xlane.xlu0 %643
          %v645 = vsel %vm604, %v627, 0.0
          %646 = vadd.xlane.f32.xlu0 %v645
          %v647 = vpop.xlane.xlu0 %646
          %v648 = vsel %vm604, %v628, 0.0
          %649 = vadd.xlane.f32.xlu0 %v648
          %v650 = vpop.xlane.xlu0 %649
          %v651 = vsel %vm604, %v629, 0.0
          %652 = vadd.xlane.f32.xlu0 %v651
          %v653 = vpop.xlane.xlu0 %652
          %v654 = vmax.f32 %v632, %v644
          %v655 = vmax.f32 %v635, %v647
          %v656 = vmax.f32 %v638, %v650
          %v657 = vmax.f32 %v641, %v653
          %v658 = vsub.f32 %v632, %v654
          %v659 = vsub.f32 %v635, %v655
          %v660 = vsub.f32 %v638, %v656
          %v661 = vsub.f32 %v641, %v657
          %v662 = vmul.f32 %v658, 1.442695
          %v663 = vpow.pop %v662
          %v664 = vmul.f32 %v659, 1.442695
          %v665 = vpow.pop %v664
          %v666 = vmul.f32 %v660, 1.442695
          %v667 = vpow.pop %v666
          %v668 = vmul.f32 %v661, 1.442695
          %v669 = vpow.pop %v668
          %v670 = vsub.f32 %v644, %v654
          %v671 = vsub.f32 %v647, %v655
          %v672 = vsub.f32 %v650, %v656
          %v673 = vsub.f32 %v653, %v657
          %v674 = vmul.f32 %v670, 1.442695
          %v675 = vpow.pop %v674
          %v676 = vmul.f32 %v671, 1.442695
          %v677 = vpow.pop %v676
          %v678 = vmul.f32 %v672, 1.442695
          %v679 = vpow.pop %v678
          %v680 = vmul.f32 %v673, 1.442695
          %v681 = vpow.pop %v680
          %v682 = vadd.f32 %v663, %v675
          %v683 = vadd.f32 %v665, %v677
          %v684 = vadd.f32 %v667, %v679
          %v685 = vadd.f32 %v669, %v681
          %v686 = vrcp.pop %v682
          %v687 = vrcp.pop %v683
          %v688 = vrcp.pop %v684
          %v689 = vrcp.pop %v685
          %v690 = vmul.f32 %v663, %v686
          %v691 = vmul.f32 %v665, %v687
          %v692 = vmul.f32 %v667, %v688
          %v693 = vmul.f32 %v669, %v689
          %v694 = vsub.f32 %v456, %v580
          %v695 = vsub.f32 %v457, %v581
          %v696 = vsub.f32 %v458, %v582
          %v697 = vsub.f32 %v459, %v583
          %v698 = vmul.f32 %v690, %v694
          %v699 = vmul.f32 %v691, %v695
          %v700 = vmul.f32 %v692, %v696
          %v701 = vmul.f32 %v693, %v697
          %v702 = vadd.f32 %v580, %v698
          %v703 = vadd.f32 %v581, %v699
          %v704 = vadd.f32 %v582, %v700
          %v705 = vadd.f32 %v583, %v701
          %v706 = vpack.c.bf16 %v702, %v702
          %v707 = vpack.c.bf16 %v703, %v703
          %v708 = vpack.c.bf16 %v704, %v704
          %v709 = vpack.c.bf16 %v705, %v705
          %s710 = smul.addr %s325, 4
          %s711 = scalar_lea.vmem %s274, %s710 [#allocation2]
          %712 = vst [vmem:[%s711] sm:$0xf] %v706
          %713 = vst [vmem:[%s711 + $0x4] sm:$0xf] %v707
          %714 = vst [vmem:[%s711 + $0x8] sm:$0xf] %v708
          %715 = vst [vmem:[%s711 + $0xc] sm:$0xf] %v709
        $region53: #{tpu_custom_call.1} parent=47 // loop_footer
          %s324 = sadd.s32 1, %s320
        $region54: #{tpu_custom_call.1} parent=47 // loop_footer_branch
          %319 = sbr.rel target = $region50
        $region55: #{tpu_custom_call.1} parent=47 // loop_exit
          _
        %s716 = sand.u32 %s181, 1
        %s717 = scalar_lea.sflag [#allocation3], %s716
        %s718 = sand.u32 %s181, 1
        %s719 = smul.addr %s718, 32
        %s720 = scalar_lea.vmem [#allocation2], %s719
        // Predicated region
        $region56: #{tpu_custom_call.1} parent=47 // pred_check
          %p721 = pneg %p191
        $region57: #{tpu_custom_call.1} parent=47 // pred_check_branch
          %723 = sbr.rel (%p721) target = $region59
        $region58: #{tpu_custom_call.1} parent=47 // pred_region
          %s724 = smul.u32 2, %s21
          %726 = vsyncadd %s717, 0
          %s727 = smul.addr %s724, 4
          %s728 = smul.addr %s727, 4
          %s729 = scalar_lea.hbm %s7, %s728
          %s730 = sshll.u32 %s720, 4
          %s731 = int_to_ptr.vmem [resolvable:$true] %s730
          %s732 = sshll.u32 %s729, 4
          %s733 = int_to_ptr.hbm [resolvable:$true] %s732
          %738 = dma.vmem_to_hbm [thread:$0]  %s731, 512, %s733, %s717, 64, 64, 4
        $region59: #{tpu_custom_call.1} parent=47 // pred_fallthru
          _
      $region48: #{tpu_custom_call.1} parent=5 // pred_fallthru
        _
      %p739 = scmp.le.s32.totalorder 2, %s16
      // Predicated region
      $region60: #{tpu_custom_call.1} parent=5 // pred_check
        %p740 = pneg %p739
      $region61: #{tpu_custom_call.1} parent=5 // pred_check_branch
        %742 = sbr.rel (%p740) target = $region63
      $region62: #{tpu_custom_call.1} parent=5 // pred_region
        %s743 = ssub.s32 %s16, 2
        // Predicated region
        $region64: #{tpu_custom_call.1} parent=62 // pred_check
          %p744 = pneg %p197
        $region65: #{tpu_custom_call.1} parent=62 // pred_check_branch
          %746 = sbr.rel (%p744) target = $region67
        $region66: #{tpu_custom_call.1} parent=62 // pred_region
          %s747 = sand.u32 %s182, 1
          %s748 = scalar_lea.sflag [#allocation3], %s747
          %s749 = sand.u32 %s182, 1
          %s750 = smul.addr %s749, 32
          %s751 = scalar_lea.vmem [#allocation2], %s750
          %753 = dma.done %s748, 512
        $region67: #{tpu_custom_call.1} parent=62 // pred_fallthru
          _
      $region63: #{tpu_custom_call.1} parent=5 // pred_fallthru
        _
    $region6: #{tpu_custom_call.1} parent=1 // loop_footer
      %s20 = sadd.s32 1, %s16
    $region7: #{tpu_custom_call.1} parent=1 // loop_footer_branch
      %15 = sbr.rel target = $region3
    $region8: #{tpu_custom_call.1} parent=1 // loop_exit
      _
    %754 = vsyncpa [#allocation3], 1
    %s755 = scalar_lea.sflag [#allocation3], 1
    %756 = vsyncpa %s755, 1

</llo_original>
